<compile_context>
chip_gen: v6e
topology: v6e:2x2x1
jax: 0.10.0
libtpu: 0.0.40
codegen_flags: <defaults>
</compile_context>

<pallas_src>
import functools

import jax
import jax.numpy as jnp
from jax.experimental import pallas as pl
from jax.experimental.pallas import tpu as pltpu


def _round_up(x, m):
    return (x + m - 1) // m * m


def _arc_relpos_kernel(idx_ref, nbr_ref, latents_ref, relpos_ref, out_ref,
                       *, K, D, TB, out_dim):
    # idx_ref     : (B_pad,)      int32  SMEM (scalar prefetch)
    # nbr_ref     : (G*K,)        int32  SMEM (scalar prefetch)
    # latents_ref : (L, D)        f32    VMEM (whole-array resident)
    # relpos_ref  : (G, 2K)       f32    VMEM (whole-array resident)
    # out_ref     : (TB, out_pad) f32    VMEM output block (lane-padded to 128)
    base = pl.program_id(0) * TB

    # One dense full-width store zeroes the block (covers the padding lanes).
    out_ref[...] = jnp.zeros_like(out_ref)

    # TB and K are small & static — fully unrolled scalar-indexed row loads.
    for b in range(TB):
        g = idx_ref[base + b]                        # grid-point id (SMEM scalar)
        for k in range(K):
            nid = nbr_ref[g * K + k]                 # neighbour latent id (SMEM scalar)
            vec = latents_ref[pl.ds(nid, 1), :]      # (1, D) dynamic row load
            out_ref[b:b + 1, k * D:(k + 1) * D] = vec
        rel = relpos_ref[pl.ds(g, 1), :]             # (1, 2K) dynamic row load
        out_ref[b:b + 1, K * D:out_dim] = rel


def arc_relpos_forward(idx_flat, idxcache, latents, relpos_cache, *, block_b=8):
    """Pallas TPU implementation of ArcRelativePosEncoder.forward."""
    B = int(idx_flat.shape[0])
    G, K = idxcache.shape
    L, D = latents.shape
    out_dim = K * D + 2 * K
    out_pad = _round_up(out_dim, 128)     # lane-dense output slab
    TB = block_b                          # batch rows per grid step (multiple of 8)
    B_pad = _round_up(max(B, TB), TB)

    idx_pad = jnp.zeros((B_pad,), jnp.int32).at[:B].set(idx_flat.astype(jnp.int32))
    nbr_flat = idxcache.reshape(G * K).astype(jnp.int32)
    relpos_flat = relpos_cache.reshape(G, 2 * K).astype(jnp.float32)
    latents_f32 = latents.astype(jnp.float32)

    kernel = functools.partial(_arc_relpos_kernel, K=int(K), D=int(D),
                               TB=TB, out_dim=out_dim)

    grid_spec = pltpu.PrefetchScalarGridSpec(
        num_scalar_prefetch=2,               # idx_flat, idxcache -> SMEM
        grid=(B_pad // TB,),
        in_specs=[
            pl.BlockSpec((L, D), lambda i, idx, nbr: (0, 0)),       # latents (resident)
            pl.BlockSpec((G, 2 * K), lambda i, idx, nbr: (0, 0)),   # relpos  (resident)
        ],
        out_specs=pl.BlockSpec((TB, out_pad), lambda i, idx, nbr: (i, 0)),
    )

    out_padded = pl.pallas_call(
        kernel,
        out_shape=jax.ShapeDtypeStruct((B_pad, out_pad), jnp.float32),
        grid_spec=grid_spec,
        compiler_params=pltpu.CompilerParams(
            dimension_semantics=("parallel",)),
    )(idx_pad, nbr_flat, latents_f32, relpos_flat)

    return out_padded[:B, :out_dim]


def get_nn_information(latents_pos, integer_grid, num_neighs, normalise=True):
    """Plain-JAX re-implementation of get_NN_information (one-time preprocessing)."""
    # TODO(synk): sklearn NearestNeighbors has no Pallas equivalent; the NN cache is
    # built once in plain JAX (argsort over pairwise squared distances).
    d2 = jnp.sum((integer_grid[:, None, :] - latents_pos[None, :, :]) ** 2, axis=-1)
    indices = jnp.argsort(d2, axis=1)[:, :num_neighs]                 # (G, K)
    relpos = latents_pos[indices] - integer_grid[:, None, :]          # (G, K, 2)
    if normalise:
        mean = relpos.mean()
        std = relpos.std(ddof=1)   # torch.std default is unbiased
        relpos = (relpos - mean) / std
    return indices.astype(jnp.int32), relpos.astype(jnp.float32)


if __name__ == "__main__":
    key = jax.random.PRNGKey(0)
    k_pos, k_lat, k_idx = jax.random.split(key, 3)

    # module hyper-params (small, consistent with __init__)
    num_latents = 32     # L
    latent_dim = 8       # D
    num_neighbours = 4   # K
    grid_side = 4        # G = 16 integer grid points
    batch = 8            # B

    # parameters (deterministic synthetic init)
    latents_pos = jax.random.normal(k_pos, (num_latents, 2), jnp.float32) * grid_side
    latents = jax.random.uniform(k_lat, (num_latents, latent_dim), jnp.float32,
                                 -0.0001, 0.0001)

    gx, gy = jnp.meshgrid(jnp.arange(grid_side), jnp.arange(grid_side), indexing="ij")
    integer_grid = jnp.stack([gx.ravel(), gy.ravel()], axis=-1).astype(jnp.float32)  # (16, 2)

    idxcache, relpos_cache = get_nn_information(latents_pos, integer_grid,
                                                num_neighbours, normalise=True)

    G = integer_grid.shape[0]
    idx_flat = jax.random.randint(k_idx, (batch,), 0, G, dtype=jnp.int32)

    out = arc_relpos_forward(idx_flat, idxcache, latents, relpos_cache)
    out = jax.block_until_ready(out)

    # pure-JAX reference of the forward pass
    nbr = idxcache[idx_flat]                                   # (B, K)
    ref = jnp.concatenate(
        [latents[nbr].reshape(batch, -1),                      # (B, K*D)
         relpos_cache[idx_flat].reshape(batch, -1)],           # (B, 2K)
        axis=1)

    assert out.shape == (batch, num_neighbours * latent_dim + 2 * num_neighbours)
    assert jnp.allclose(out, ref, rtol=1e-6, atol=1e-7), "kernel mismatch vs reference"
    print("KERNEL_OK")
</pallas_src>

<mosaic_0001>
module attributes {stable_mosaic.version = 11 : i64} {
  func.func @_arc_relpos_kernel(%arg0: i32, %arg1: memref<8xi32, #tpu.memory_space<smem>>, %arg2: memref<64xi32, #tpu.memory_space<smem>>, %arg3: memref<32x8xf32, #tpu.memory_space<vmem>>, %arg4: memref<16x8xf32, #tpu.memory_space<vmem>>, %arg5: memref<8x128xf32, #tpu.memory_space<vmem>>) attributes {dimension_semantics = [#tpu.dimension_semantics<parallel>], iteration_bounds = array<i64: 1>, scalar_prefetch = 2 : i64, scratch_operands = 0 : i64, tpu.core_type = #tpu.core_type<tc>, window_params = [{pipeline_mode = #tpu.pipeline_mode<synchronous>, transform_indices = @transform_0, window_bounds = array<i64: 32, 8>}, {pipeline_mode = #tpu.pipeline_mode<synchronous>, transform_indices = @transform_1, window_bounds = array<i64: 16, 8>}, {transform_indices = @transform_2, window_bounds = array<i64: 8, 128>}]} {
    %c8_i32 = arith.constant 8 : i32
    %0 = arith.muli %arg0, %c8_i32 : i32
    %cst = arith.constant 0.000000e+00 : f32
    %1 = vector.broadcast %cst : f32 to vector<8x128xf32>
    %c0 = arith.constant 0 : index
    %c0_0 = arith.constant 0 : index
    %2 = vector.load %arg5[%c0, %c0_0] : memref<8x128xf32, #tpu.memory_space<vmem>>, vector<8x128xf32>
    tpu.vector_store %arg5[%c0, %c0_0], %1 {strides = array<i32>} : memref<8x128xf32, #tpu.memory_space<vmem>>, vector<8x128xf32>,
    %c0_i32 = arith.constant 0 : i32
    %3 = arith.addi %0, %c0_i32 : i32
    %4 = arith.index_cast %3 : i32 to index
    %5 = memref.load %arg1[%4] : memref<8xi32, #tpu.memory_space<smem>>
    %c4_i32 = arith.constant 4 : i32
    %6 = arith.muli %5, %c4_i32 : i32
    %c0_i32_1 = arith.constant 0 : i32
    %7 = arith.addi %6, %c0_i32_1 : i32
    %8 = arith.index_cast %7 : i32 to index
    %9 = memref.load %arg2[%8] : memref<64xi32, #tpu.memory_space<smem>>
    %10 = arith.index_cast %9 : i32 to index
    %c0_2 = arith.constant 0 : index
    %11 = vector.load %arg3[%10, %c0_2] : memref<32x8xf32, #tpu.memory_space<vmem>>, vector<1x8xf32>
    %c0_3 = arith.constant 0 : index
    %c0_4 = arith.constant 0 : index
    %12 = vector.load %arg5[%c0_3, %c0_4] : memref<8x128xf32, #tpu.memory_space<vmem>>, vector<1x8xf32>
    tpu.vector_store %arg5[%c0_3, %c0_4], %11 {strides = array<i32>} : memref<8x128xf32, #tpu.memory_space<vmem>>, vector<1x8xf32>,
    %c4_i32_5 = arith.constant 4 : i32
    %13 = arith.muli %5, %c4_i32_5 : i32
    %c1_i32 = arith.constant 1 : i32
    %14 = arith.addi %13, %c1_i32 : i32
    %15 = arith.index_cast %14 : i32 to index
    %16 = memref.load %arg2[%15] : memref<64xi32, #tpu.memory_space<smem>>
    %17 = arith.index_cast %16 : i32 to index
    %c0_6 = arith.constant 0 : index
    %18 = vector.load %arg3[%17, %c0_6] : memref<32x8xf32, #tpu.memory_space<vmem>>, vector<1x8xf32>
    %c0_7 = arith.constant 0 : index
    %c8 = arith.constant 8 : index
    %19 = vector.load %arg5[%c0_7, %c8] : memref<8x128xf32, #tpu.memory_space<vmem>>, vector<1x8xf32>
    tpu.vector_store %arg5[%c0_7, %c8], %18 {strides = array<i32>} : memref<8x128xf32, #tpu.memory_space<vmem>>, vector<1x8xf32>,
    %c4_i32_8 = arith.constant 4 : i32
    %20 = arith.muli %5, %c4_i32_8 : i32
    %c2_i32 = arith.constant 2 : i32
    %21 = arith.addi %20, %c2_i32 : i32
    %22 = arith.index_cast %21 : i32 to index
    %23 = memref.load %arg2[%22] : memref<64xi32, #tpu.memory_space<smem>>
    %24 = arith.index_cast %23 : i32 to index
    %c0_9 = arith.constant 0 : index
    %25 = vector.load %arg3[%24, %c0_9] : memref<32x8xf32, #tpu.memory_space<vmem>>, vector<1x8xf32>
    %c0_10 = arith.constant 0 : index
    %c16 = arith.constant 16 : index
    %26 = vector.load %arg5[%c0_10, %c16] : memref<8x128xf32, #tpu.memory_space<vmem>>, vector<1x8xf32>
    tpu.vector_store %arg5[%c0_10, %c16], %25 {strides = array<i32>} : memref<8x128xf32, #tpu.memory_space<vmem>>, vector<1x8xf32>,
    %c4_i32_11 = arith.constant 4 : i32
    %27 = arith.muli %5, %c4_i32_11 : i32
    %c3_i32 = arith.constant 3 : i32
    %28 = arith.addi %27, %c3_i32 : i32
    %29 = arith.index_cast %28 : i32 to index
    %30 = memref.load %arg2[%29] : memref<64xi32, #tpu.memory_space<smem>>
    %31 = arith.index_cast %30 : i32 to index
    %c0_12 = arith.constant 0 : index
    %32 = vector.load %arg3[%31, %c0_12] : memref<32x8xf32, #tpu.memory_space<vmem>>, vector<1x8xf32>
    %c0_13 = arith.constant 0 : index
    %c24 = arith.constant 24 : index
    %33 = vector.load %arg5[%c0_13, %c24] : memref<8x128xf32, #tpu.memory_space<vmem>>, vector<1x8xf32>
    tpu.vector_store %arg5[%c0_13, %c24], %32 {strides = array<i32>} : memref<8x128xf32, #tpu.memory_space<vmem>>, vector<1x8xf32>,
    %34 = arith.index_cast %5 : i32 to index
    %c0_14 = arith.constant 0 : index
    %35 = vector.load %arg4[%34, %c0_14] : memref<16x8xf32, #tpu.memory_space<vmem>>, vector<1x8xf32>
    %c0_15 = arith.constant 0 : index
    %c32 = arith.constant 32 : index
    %36 = vector.load %arg5[%c0_15, %c32] : memref<8x128xf32, #tpu.memory_space<vmem>>, vector<1x8xf32>
    tpu.vector_store %arg5[%c0_15, %c32], %35 {strides = array<i32>} : memref<8x128xf32, #tpu.memory_space<vmem>>, vector<1x8xf32>,
    %c1_i32_16 = arith.constant 1 : i32
    %37 = arith.addi %0, %c1_i32_16 : i32
    %38 = arith.index_cast %37 : i32 to index
    %39 = memref.load %arg1[%38] : memref<8xi32, #tpu.memory_space<smem>>
    %c4_i32_17 = arith.constant 4 : i32
    %40 = arith.muli %39, %c4_i32_17 : i32
    %c0_i32_18 = arith.constant 0 : i32
    %41 = arith.addi %40, %c0_i32_18 : i32
    %42 = arith.index_cast %41 : i32 to index
    %43 = memref.load %arg2[%42] : memref<64xi32, #tpu.memory_space<smem>>
    %44 = arith.index_cast %43 : i32 to index
    %c0_19 = arith.constant 0 : index
    %45 = vector.load %arg3[%44, %c0_19] : memref<32x8xf32, #tpu.memory_space<vmem>>, vector<1x8xf32>
    %c1 = arith.constant 1 : index
    %c0_20 = arith.constant 0 : index
    %46 = vector.load %arg5[%c1, %c0_20] : memref<8x128xf32, #tpu.memory_space<vmem>>, vector<1x8xf32>
    tpu.vector_store %arg5[%c1, %c0_20], %45 {strides = array<i32>} : memref<8x128xf32, #tpu.memory_space<vmem>>, vector<1x8xf32>,
    %c4_i32_21 = arith.constant 4 : i32
    %47 = arith.muli %39, %c4_i32_21 : i32
    %c1_i32_22 = arith.constant 1 : i32
    %48 = arith.addi %47, %c1_i32_22 : i32
    %49 = arith.index_cast %48 : i32 to index
    %50 = memref.load %arg2[%49] : memref<64xi32, #tpu.memory_space<smem>>
    %51 = arith.index_cast %50 : i32 to index
    %c0_23 = arith.constant 0 : index
    %52 = vector.load %arg3[%51, %c0_23] : memref<32x8xf32, #tpu.memory_space<vmem>>, vector<1x8xf32>
    %c1_24 = arith.constant 1 : index
    %c8_25 = arith.constant 8 : index
    %53 = vector.load %arg5[%c1_24, %c8_25] : memref<8x128xf32, #tpu.memory_space<vmem>>, vector<1x8xf32>
    tpu.vector_store %arg5[%c1_24, %c8_25], %52 {strides = array<i32>} : memref<8x128xf32, #tpu.memory_space<vmem>>, vector<1x8xf32>,
    %c4_i32_26 = arith.constant 4 : i32
    %54 = arith.muli %39, %c4_i32_26 : i32
    %c2_i32_27 = arith.constant 2 : i32
    %55 = arith.addi %54, %c2_i32_27 : i32
    %56 = arith.index_cast %55 : i32 to index
    %57 = memref.load %arg2[%56] : memref<64xi32, #tpu.memory_space<smem>>
    %58 = arith.index_cast %57 : i32 to index
    %c0_28 = arith.constant 0 : index
    %59 = vector.load %arg3[%58, %c0_28] : memref<32x8xf32, #tpu.memory_space<vmem>>, vector<1x8xf32>
    %c1_29 = arith.constant 1 : index
    %c16_30 = arith.constant 16 : index
    %60 = vector.load %arg5[%c1_29, %c16_30] : memref<8x128xf32, #tpu.memory_space<vmem>>, vector<1x8xf32>
    tpu.vector_store %arg5[%c1_29, %c16_30], %59 {strides = array<i32>} : memref<8x128xf32, #tpu.memory_space<vmem>>, vector<1x8xf32>,
    %c4_i32_31 = arith.constant 4 : i32
    %61 = arith.muli %39, %c4_i32_31 : i32
    %c3_i32_32 = arith.constant 3 : i32
    %62 = arith.addi %61, %c3_i32_32 : i32
    %63 = arith.index_cast %62 : i32 to index
    %64 = memref.load %arg2[%63] : memref<64xi32, #tpu.memory_space<smem>>
    %65 = arith.index_cast %64 : i32 to index
    %c0_33 = arith.constant 0 : index
    %66 = vector.load %arg3[%65, %c0_33] : memref<32x8xf32, #tpu.memory_space<vmem>>, vector<1x8xf32>
    %c1_34 = arith.constant 1 : index
    %c24_35 = arith.constant 24 : index
    %67 = vector.load %arg5[%c1_34, %c24_35] : memref<8x128xf32, #tpu.memory_space<vmem>>, vector<1x8xf32>
    tpu.vector_store %arg5[%c1_34, %c24_35], %66 {strides = array<i32>} : memref<8x128xf32, #tpu.memory_space<vmem>>, vector<1x8xf32>,
    %68 = arith.index_cast %39 : i32 to index
    %c0_36 = arith.constant 0 : index
    %69 = vector.load %arg4[%68, %c0_36] : memref<16x8xf32, #tpu.memory_space<vmem>>, vector<1x8xf32>
    %c1_37 = arith.constant 1 : index
    %c32_38 = arith.constant 32 : index
    %70 = vector.load %arg5[%c1_37, %c32_38] : memref<8x128xf32, #tpu.memory_space<vmem>>, vector<1x8xf32>
    tpu.vector_store %arg5[%c1_37, %c32_38], %69 {strides = array<i32>} : memref<8x128xf32, #tpu.memory_space<vmem>>, vector<1x8xf32>,
    %c2_i32_39 = arith.constant 2 : i32
    %71 = arith.addi %0, %c2_i32_39 : i32
    %72 = arith.index_cast %71 : i32 to index
    %73 = memref.load %arg1[%72] : memref<8xi32, #tpu.memory_space<smem>>
    %c4_i32_40 = arith.constant 4 : i32
    %74 = arith.muli %73, %c4_i32_40 : i32
    %c0_i32_41 = arith.constant 0 : i32
    %75 = arith.addi %74, %c0_i32_41 : i32
    %76 = arith.index_cast %75 : i32 to index
    %77 = memref.load %arg2[%76] : memref<64xi32, #tpu.memory_space<smem>>
    %78 = arith.index_cast %77 : i32 to index
    %c0_42 = arith.constant 0 : index
    %79 = vector.load %arg3[%78, %c0_42] : memref<32x8xf32, #tpu.memory_space<vmem>>, vector<1x8xf32>
    %c2 = arith.constant 2 : index
    %c0_43 = arith.constant 0 : index
    %80 = vector.load %arg5[%c2, %c0_43] : memref<8x128xf32, #tpu.memory_space<vmem>>, vector<1x8xf32>
    tpu.vector_store %arg5[%c2, %c0_43], %79 {strides = array<i32>} : memref<8x128xf32, #tpu.memory_space<vmem>>, vector<1x8xf32>,
    %c4_i32_44 = arith.constant 4 : i32
    %81 = arith.muli %73, %c4_i32_44 : i32
    %c1_i32_45 = arith.constant 1 : i32
    %82 = arith.addi %81, %c1_i32_45 : i32
    %83 = arith.index_cast %82 : i32 to index
    %84 = memref.load %arg2[%83] : memref<64xi32, #tpu.memory_space<smem>>
    %85 = arith.index_cast %84 : i32 to index
    %c0_46 = arith.constant 0 : index
    %86 = vector.load %arg3[%85, %c0_46] : memref<32x8xf32, #tpu.memory_space<vmem>>, vector<1x8xf32>
    %c2_47 = arith.constant 2 : index
    %c8_48 = arith.constant 8 : index
    %87 = vector.load %arg5[%c2_47, %c8_48] : memref<8x128xf32, #tpu.memory_space<vmem>>, vector<1x8xf32>
    tpu.vector_store %arg5[%c2_47, %c8_48], %86 {strides = array<i32>} : memref<8x128xf32, #tpu.memory_space<vmem>>, vector<1x8xf32>,
    %c4_i32_49 = arith.constant 4 : i32
    %88 = arith.muli %73, %c4_i32_49 : i32
    %c2_i32_50 = arith.constant 2 : i32
    %89 = arith.addi %88, %c2_i32_50 : i32
    %90 = arith.index_cast %89 : i32 to index
    %91 = memref.load %arg2[%90] : memref<64xi32, #tpu.memory_space<smem>>
    %92 = arith.index_cast %91 : i32 to index
    %c0_51 = arith.constant 0 : index
    %93 = vector.load %arg3[%92, %c0_51] : memref<32x8xf32, #tpu.memory_space<vmem>>, vector<1x8xf32>
    %c2_52 = arith.constant 2 : index
    %c16_53 = arith.constant 16 : index
    %94 = vector.load %arg5[%c2_52, %c16_53] : memref<8x128xf32, #tpu.memory_space<vmem>>, vector<1x8xf32>
    tpu.vector_store %arg5[%c2_52, %c16_53], %93 {strides = array<i32>} : memref<8x128xf32, #tpu.memory_space<vmem>>, vector<1x8xf32>,
    %c4_i32_54 = arith.constant 4 : i32
    %95 = arith.muli %73, %c4_i32_54 : i32
    %c3_i32_55 = arith.constant 3 : i32
    %96 = arith.addi %95, %c3_i32_55 : i32
    %97 = arith.index_cast %96 : i32 to index
    %98 = memref.load %arg2[%97] : memref<64xi32, #tpu.memory_space<smem>>
    %99 = arith.index_cast %98 : i32 to index
    %c0_56 = arith.constant 0 : index
    %100 = vector.load %arg3[%99, %c0_56] : memref<32x8xf32, #tpu.memory_space<vmem>>, vector<1x8xf32>
    %c2_57 = arith.constant 2 : index
    %c24_58 = arith.constant 24 : index
    %101 = vector.load %arg5[%c2_57, %c24_58] : memref<8x128xf32, #tpu.memory_space<vmem>>, vector<1x8xf32>
    tpu.vector_store %arg5[%c2_57, %c24_58], %100 {strides = array<i32>} : memref<8x128xf32, #tpu.memory_space<vmem>>, vector<1x8xf32>,
    %102 = arith.index_cast %73 : i32 to index
    %c0_59 = arith.constant 0 : index
    %103 = vector.load %arg4[%102, %c0_59] : memref<16x8xf32, #tpu.memory_space<vmem>>, vector<1x8xf32>
    %c2_60 = arith.constant 2 : index
    %c32_61 = arith.constant 32 : index
    %104 = vector.load %arg5[%c2_60, %c32_61] : memref<8x128xf32, #tpu.memory_space<vmem>>, vector<1x8xf32>
    tpu.vector_store %arg5[%c2_60, %c32_61], %103 {strides = array<i32>} : memref<8x128xf32, #tpu.memory_space<vmem>>, vector<1x8xf32>,
    %c3_i32_62 = arith.constant 3 : i32
    %105 = arith.addi %0, %c3_i32_62 : i32
    %106 = arith.index_cast %105 : i32 to index
    %107 = memref.load %arg1[%106] : memref<8xi32, #tpu.memory_space<smem>>
    %c4_i32_63 = arith.constant 4 : i32
    %108 = arith.muli %107, %c4_i32_63 : i32
    %c0_i32_64 = arith.constant 0 : i32
    %109 = arith.addi %108, %c0_i32_64 : i32
    %110 = arith.index_cast %109 : i32 to index
    %111 = memref.load %arg2[%110] : memref<64xi32, #tpu.memory_space<smem>>
    %112 = arith.index_cast %111 : i32 to index
    %c0_65 = arith.constant 0 : index
    %113 = vector.load %arg3[%112, %c0_65] : memref<32x8xf32, #tpu.memory_space<vmem>>, vector<1x8xf32>
    %c3 = arith.constant 3 : index
    %c0_66 = arith.constant 0 : index
    %114 = vector.load %arg5[%c3, %c0_66] : memref<8x128xf32, #tpu.memory_space<vmem>>, vector<1x8xf32>
    tpu.vector_store %arg5[%c3, %c0_66], %113 {strides = array<i32>} : memref<8x128xf32, #tpu.memory_space<vmem>>, vector<1x8xf32>,
    %c4_i32_67 = arith.constant 4 : i32
    %115 = arith.muli %107, %c4_i32_67 : i32
    %c1_i32_68 = arith.constant 1 : i32
    %116 = arith.addi %115, %c1_i32_68 : i32
    %117 = arith.index_cast %116 : i32 to index
    %118 = memref.load %arg2[%117] : memref<64xi32, #tpu.memory_space<smem>>
    %119 = arith.index_cast %118 : i32 to index
    %c0_69 = arith.constant 0 : index
    %120 = vector.load %arg3[%119, %c0_69] : memref<32x8xf32, #tpu.memory_space<vmem>>, vector<1x8xf32>
    %c3_70 = arith.constant 3 : index
    %c8_71 = arith.constant 8 : index
    %121 = vector.load %arg5[%c3_70, %c8_71] : memref<8x128xf32, #tpu.memory_space<vmem>>, vector<1x8xf32>
    tpu.vector_store %arg5[%c3_70, %c8_71], %120 {strides = array<i32>} : memref<8x128xf32, #tpu.memory_space<vmem>>, vector<1x8xf32>,
    %c4_i32_72 = arith.constant 4 : i32
    %122 = arith.muli %107, %c4_i32_72 : i32
    %c2_i32_73 = arith.constant 2 : i32
    %123 = arith.addi %122, %c2_i32_73 : i32
    %124 = arith.index_cast %123 : i32 to index
    %125 = memref.load %arg2[%124] : memref<64xi32, #tpu.memory_space<smem>>
    %126 = arith.index_cast %125 : i32 to index
    %c0_74 = arith.constant 0 : index
    %127 = vector.load %arg3[%126, %c0_74] : memref<32x8xf32, #tpu.memory_space<vmem>>, vector<1x8xf32>
    %c3_75 = arith.constant 3 : index
    %c16_76 = arith.constant 16 : index
    %128 = vector.load %arg5[%c3_75, %c16_76] : memref<8x128xf32, #tpu.memory_space<vmem>>, vector<1x8xf32>
    tpu.vector_store %arg5[%c3_75, %c16_76], %127 {strides = array<i32>} : memref<8x128xf32, #tpu.memory_space<vmem>>, vector<1x8xf32>,
    %c4_i32_77 = arith.constant 4 : i32
    %129 = arith.muli %107, %c4_i32_77 : i32
    %c3_i32_78 = arith.constant 3 : i32
    %130 = arith.addi %129, %c3_i32_78 : i32
    %131 = arith.index_cast %130 : i32 to index
    %132 = memref.load %arg2[%131] : memref<64xi32, #tpu.memory_space<smem>>
    %133 = arith.index_cast %132 : i32 to index
    %c0_79 = arith.constant 0 : index
    %134 = vector.load %arg3[%133, %c0_79] : memref<32x8xf32, #tpu.memory_space<vmem>>, vector<1x8xf32>
    %c3_80 = arith.constant 3 : index
    %c24_81 = arith.constant 24 : index
    %135 = vector.load %arg5[%c3_80, %c24_81] : memref<8x128xf32, #tpu.memory_space<vmem>>, vector<1x8xf32>
    tpu.vector_store %arg5[%c3_80, %c24_81], %134 {strides = array<i32>} : memref<8x128xf32, #tpu.memory_space<vmem>>, vector<1x8xf32>,
    %136 = arith.index_cast %107 : i32 to index
    %c0_82 = arith.constant 0 : index
    %137 = vector.load %arg4[%136, %c0_82] : memref<16x8xf32, #tpu.memory_space<vmem>>, vector<1x8xf32>
    %c3_83 = arith.constant 3 : index
    %c32_84 = arith.constant 32 : index
    %138 = vector.load %arg5[%c3_83, %c32_84] : memref<8x128xf32, #tpu.memory_space<vmem>>, vector<1x8xf32>
    tpu.vector_store %arg5[%c3_83, %c32_84], %137 {strides = array<i32>} : memref<8x128xf32, #tpu.memory_space<vmem>>, vector<1x8xf32>,
    %c4_i32_85 = arith.constant 4 : i32
    %139 = arith.addi %0, %c4_i32_85 : i32
    %140 = arith.index_cast %139 : i32 to index
    %141 = memref.load %arg1[%140] : memref<8xi32, #tpu.memory_space<smem>>
    %c4_i32_86 = arith.constant 4 : i32
    %142 = arith.muli %141, %c4_i32_86 : i32
    %c0_i32_87 = arith.constant 0 : i32
    %143 = arith.addi %142, %c0_i32_87 : i32
    %144 = arith.index_cast %143 : i32 to index
    %145 = memref.load %arg2[%144] : memref<64xi32, #tpu.memory_space<smem>>
    %146 = arith.index_cast %145 : i32 to index
    %c0_88 = arith.constant 0 : index
    %147 = vector.load %arg3[%146, %c0_88] : memref<32x8xf32, #tpu.memory_space<vmem>>, vector<1x8xf32>
    %c4 = arith.constant 4 : index
    %c0_89 = arith.constant 0 : index
    %148 = vector.load %arg5[%c4, %c0_89] : memref<8x128xf32, #tpu.memory_space<vmem>>, vector<1x8xf32>
    tpu.vector_store %arg5[%c4, %c0_89], %147 {strides = array<i32>} : memref<8x128xf32, #tpu.memory_space<vmem>>, vector<1x8xf32>,
    %c4_i32_90 = arith.constant 4 : i32
    %149 = arith.muli %141, %c4_i32_90 : i32
    %c1_i32_91 = arith.constant 1 : i32
    %150 = arith.addi %149, %c1_i32_91 : i32
    %151 = arith.index_cast %150 : i32 to index
    %152 = memref.load %arg2[%151] : memref<64xi32, #tpu.memory_space<smem>>
    %153 = arith.index_cast %152 : i32 to index
    %c0_92 = arith.constant 0 : index
    %154 = vector.load %arg3[%153, %c0_92] : memref<32x8xf32, #tpu.memory_space<vmem>>, vector<1x8xf32>
    %c4_93 = arith.constant 4 : index
    %c8_94 = arith.constant 8 : index
    %155 = vector.load %arg5[%c4_93, %c8_94] : memref<8x128xf32, #tpu.memory_space<vmem>>, vector<1x8xf32>
    tpu.vector_store %arg5[%c4_93, %c8_94], %154 {strides = array<i32>} : memref<8x128xf32, #tpu.memory_space<vmem>>, vector<1x8xf32>,
    %c4_i32_95 = arith.constant 4 : i32
    %156 = arith.muli %141, %c4_i32_95 : i32
    %c2_i32_96 = arith.constant 2 : i32
    %157 = arith.addi %156, %c2_i32_96 : i32
    %158 = arith.index_cast %157 : i32 to index
    %159 = memref.load %arg2[%158] : memref<64xi32, #tpu.memory_space<smem>>
    %160 = arith.index_cast %159 : i32 to index
    %c0_97 = arith.constant 0 : index
    %161 = vector.load %arg3[%160, %c0_97] : memref<32x8xf32, #tpu.memory_space<vmem>>, vector<1x8xf32>
    %c4_98 = arith.constant 4 : index
    %c16_99 = arith.constant 16 : index
    %162 = vector.load %arg5[%c4_98, %c16_99] : memref<8x128xf32, #tpu.memory_space<vmem>>, vector<1x8xf32>
    tpu.vector_store %arg5[%c4_98, %c16_99], %161 {strides = array<i32>} : memref<8x128xf32, #tpu.memory_space<vmem>>, vector<1x8xf32>,
    %c4_i32_100 = arith.constant 4 : i32
    %163 = arith.muli %141, %c4_i32_100 : i32
    %c3_i32_101 = arith.constant 3 : i32
    %164 = arith.addi %163, %c3_i32_101 : i32
    %165 = arith.index_cast %164 : i32 to index
    %166 = memref.load %arg2[%165] : memref<64xi32, #tpu.memory_space<smem>>
    %167 = arith.index_cast %166 : i32 to index
    %c0_102 = arith.constant 0 : index
    %168 = vector.load %arg3[%167, %c0_102] : memref<32x8xf32, #tpu.memory_space<vmem>>, vector<1x8xf32>
    %c4_103 = arith.constant 4 : index
    %c24_104 = arith.constant 24 : index
    %169 = vector.load %arg5[%c4_103, %c24_104] : memref<8x128xf32, #tpu.memory_space<vmem>>, vector<1x8xf32>
    tpu.vector_store %arg5[%c4_103, %c24_104], %168 {strides = array<i32>} : memref<8x128xf32, #tpu.memory_space<vmem>>, vector<1x8xf32>,
    %170 = arith.index_cast %141 : i32 to index
    %c0_105 = arith.constant 0 : index
    %171 = vector.load %arg4[%170, %c0_105] : memref<16x8xf32, #tpu.memory_space<vmem>>, vector<1x8xf32>
    %c4_106 = arith.constant 4 : index
    %c32_107 = arith.constant 32 : index
    %172 = vector.load %arg5[%c4_106, %c32_107] : memref<8x128xf32, #tpu.memory_space<vmem>>, vector<1x8xf32>
    tpu.vector_store %arg5[%c4_106, %c32_107], %171 {strides = array<i32>} : memref<8x128xf32, #tpu.memory_space<vmem>>, vector<1x8xf32>,
    %c5_i32 = arith.constant 5 : i32
    %173 = arith.addi %0, %c5_i32 : i32
    %174 = arith.index_cast %173 : i32 to index
    %175 = memref.load %arg1[%174] : memref<8xi32, #tpu.memory_space<smem>>
    %c4_i32_108 = arith.constant 4 : i32
    %176 = arith.muli %175, %c4_i32_108 : i32
    %c0_i32_109 = arith.constant 0 : i32
    %177 = arith.addi %176, %c0_i32_109 : i32
    %178 = arith.index_cast %177 : i32 to index
    %179 = memref.load %arg2[%178] : memref<64xi32, #tpu.memory_space<smem>>
    %180 = arith.index_cast %179 : i32 to index
    %c0_110 = arith.constant 0 : index
    %181 = vector.load %arg3[%180, %c0_110] : memref<32x8xf32, #tpu.memory_space<vmem>>, vector<1x8xf32>
    %c5 = arith.constant 5 : index
    %c0_111 = arith.constant 0 : index
    %182 = vector.load %arg5[%c5, %c0_111] : memref<8x128xf32, #tpu.memory_space<vmem>>, vector<1x8xf32>
    tpu.vector_store %arg5[%c5, %c0_111], %181 {strides = array<i32>} : memref<8x128xf32, #tpu.memory_space<vmem>>, vector<1x8xf32>,
    %c4_i32_112 = arith.constant 4 : i32
    %183 = arith.muli %175, %c4_i32_112 : i32
    %c1_i32_113 = arith.constant 1 : i32
    %184 = arith.addi %183, %c1_i32_113 : i32
    %185 = arith.index_cast %184 : i32 to index
    %186 = memref.load %arg2[%185] : memref<64xi32, #tpu.memory_space<smem>>
    %187 = arith.index_cast %186 : i32 to index
    %c0_114 = arith.constant 0 : index
    %188 = vector.load %arg3[%187, %c0_114] : memref<32x8xf32, #tpu.memory_space<vmem>>, vector<1x8xf32>
    %c5_115 = arith.constant 5 : index
    %c8_116 = arith.constant 8 : index
    %189 = vector.load %arg5[%c5_115, %c8_116] : memref<8x128xf32, #tpu.memory_space<vmem>>, vector<1x8xf32>
    tpu.vector_store %arg5[%c5_115, %c8_116], %188 {strides = array<i32>} : memref<8x128xf32, #tpu.memory_space<vmem>>, vector<1x8xf32>,
    %c4_i32_117 = arith.constant 4 : i32
    %190 = arith.muli %175, %c4_i32_117 : i32
    %c2_i32_118 = arith.constant 2 : i32
    %191 = arith.addi %190, %c2_i32_118 : i32
    %192 = arith.index_cast %191 : i32 to index
    %193 = memref.load %arg2[%192] : memref<64xi32, #tpu.memory_space<smem>>
    %194 = arith.index_cast %193 : i32 to index
    %c0_119 = arith.constant 0 : index
    %195 = vector.load %arg3[%194, %c0_119] : memref<32x8xf32, #tpu.memory_space<vmem>>, vector<1x8xf32>
    %c5_120 = arith.constant 5 : index
    %c16_121 = arith.constant 16 : index
    %196 = vector.load %arg5[%c5_120, %c16_121] : memref<8x128xf32, #tpu.memory_space<vmem>>, vector<1x8xf32>
    tpu.vector_store %arg5[%c5_120, %c16_121], %195 {strides = array<i32>} : memref<8x128xf32, #tpu.memory_space<vmem>>, vector<1x8xf32>,
    %c4_i32_122 = arith.constant 4 : i32
    %197 = arith.muli %175, %c4_i32_122 : i32
    %c3_i32_123 = arith.constant 3 : i32
    %198 = arith.addi %197, %c3_i32_123 : i32
    %199 = arith.index_cast %198 : i32 to index
    %200 = memref.load %arg2[%199] : memref<64xi32, #tpu.memory_space<smem>>
    %201 = arith.index_cast %200 : i32 to index
    %c0_124 = arith.constant 0 : index
    %202 = vector.load %arg3[%201, %c0_124] : memref<32x8xf32, #tpu.memory_space<vmem>>, vector<1x8xf32>
    %c5_125 = arith.constant 5 : index
    %c24_126 = arith.constant 24 : index
    %203 = vector.load %arg5[%c5_125, %c24_126] : memref<8x128xf32, #tpu.memory_space<vmem>>, vector<1x8xf32>
    tpu.vector_store %arg5[%c5_125, %c24_126], %202 {strides = array<i32>} : memref<8x128xf32, #tpu.memory_space<vmem>>, vector<1x8xf32>,
    %204 = arith.index_cast %175 : i32 to index
    %c0_127 = arith.constant 0 : index
    %205 = vector.load %arg4[%204, %c0_127] : memref<16x8xf32, #tpu.memory_space<vmem>>, vector<1x8xf32>
    %c5_128 = arith.constant 5 : index
    %c32_129 = arith.constant 32 : index
    %206 = vector.load %arg5[%c5_128, %c32_129] : memref<8x128xf32, #tpu.memory_space<vmem>>, vector<1x8xf32>
    tpu.vector_store %arg5[%c5_128, %c32_129], %205 {strides = array<i32>} : memref<8x128xf32, #tpu.memory_space<vmem>>, vector<1x8xf32>,
    %c6_i32 = arith.constant 6 : i32
    %207 = arith.addi %0, %c6_i32 : i32
    %208 = arith.index_cast %207 : i32 to index
    %209 = memref.load %arg1[%208] : memref<8xi32, #tpu.memory_space<smem>>
    %c4_i32_130 = arith.constant 4 : i32
    %210 = arith.muli %209, %c4_i32_130 : i32
    %c0_i32_131 = arith.constant 0 : i32
    %211 = arith.addi %210, %c0_i32_131 : i32
    %212 = arith.index_cast %211 : i32 to index
    %213 = memref.load %arg2[%212] : memref<64xi32, #tpu.memory_space<smem>>
    %214 = arith.index_cast %213 : i32 to index
    %c0_132 = arith.constant 0 : index
    %215 = vector.load %arg3[%214, %c0_132] : memref<32x8xf32, #tpu.memory_space<vmem>>, vector<1x8xf32>
    %c6 = arith.constant 6 : index
    %c0_133 = arith.constant 0 : index
    %216 = vector.load %arg5[%c6, %c0_133] : memref<8x128xf32, #tpu.memory_space<vmem>>, vector<1x8xf32>
    tpu.vector_store %arg5[%c6, %c0_133], %215 {strides = array<i32>} : memref<8x128xf32, #tpu.memory_space<vmem>>, vector<1x8xf32>,
    %c4_i32_134 = arith.constant 4 : i32
    %217 = arith.muli %209, %c4_i32_134 : i32
    %c1_i32_135 = arith.constant 1 : i32
    %218 = arith.addi %217, %c1_i32_135 : i32
    %219 = arith.index_cast %218 : i32 to index
    %220 = memref.load %arg2[%219] : memref<64xi32, #tpu.memory_space<smem>>
    %221 = arith.index_cast %220 : i32 to index
    %c0_136 = arith.constant 0 : index
    %222 = vector.load %arg3[%221, %c0_136] : memref<32x8xf32, #tpu.memory_space<vmem>>, vector<1x8xf32>
    %c6_137 = arith.constant 6 : index
    %c8_138 = arith.constant 8 : index
    %223 = vector.load %arg5[%c6_137, %c8_138] : memref<8x128xf32, #tpu.memory_space<vmem>>, vector<1x8xf32>
    tpu.vector_store %arg5[%c6_137, %c8_138], %222 {strides = array<i32>} : memref<8x128xf32, #tpu.memory_space<vmem>>, vector<1x8xf32>,
    %c4_i32_139 = arith.constant 4 : i32
    %224 = arith.muli %209, %c4_i32_139 : i32
    %c2_i32_140 = arith.constant 2 : i32
    %225 = arith.addi %224, %c2_i32_140 : i32
    %226 = arith.index_cast %225 : i32 to index
    %227 = memref.load %arg2[%226] : memref<64xi32, #tpu.memory_space<smem>>
    %228 = arith.index_cast %227 : i32 to index
    %c0_141 = arith.constant 0 : index
    %229 = vector.load %arg3[%228, %c0_141] : memref<32x8xf32, #tpu.memory_space<vmem>>, vector<1x8xf32>
    %c6_142 = arith.constant 6 : index
    %c16_143 = arith.constant 16 : index
    %230 = vector.load %arg5[%c6_142, %c16_143] : memref<8x128xf32, #tpu.memory_space<vmem>>, vector<1x8xf32>
    tpu.vector_store %arg5[%c6_142, %c16_143], %229 {strides = array<i32>} : memref<8x128xf32, #tpu.memory_space<vmem>>, vector<1x8xf32>,
    %c4_i32_144 = arith.constant 4 : i32
    %231 = arith.muli %209, %c4_i32_144 : i32
    %c3_i32_145 = arith.constant 3 : i32
    %232 = arith.addi %231, %c3_i32_145 : i32
    %233 = arith.index_cast %232 : i32 to index
    %234 = memref.load %arg2[%233] : memref<64xi32, #tpu.memory_space<smem>>
    %235 = arith.index_cast %234 : i32 to index
    %c0_146 = arith.constant 0 : index
    %236 = vector.load %arg3[%235, %c0_146] : memref<32x8xf32, #tpu.memory_space<vmem>>, vector<1x8xf32>
    %c6_147 = arith.constant 6 : index
    %c24_148 = arith.constant 24 : index
    %237 = vector.load %arg5[%c6_147, %c24_148] : memref<8x128xf32, #tpu.memory_space<vmem>>, vector<1x8xf32>
    tpu.vector_store %arg5[%c6_147, %c24_148], %236 {strides = array<i32>} : memref<8x128xf32, #tpu.memory_space<vmem>>, vector<1x8xf32>,
    %238 = arith.index_cast %209 : i32 to index
    %c0_149 = arith.constant 0 : index
    %239 = vector.load %arg4[%238, %c0_149] : memref<16x8xf32, #tpu.memory_space<vmem>>, vector<1x8xf32>
    %c6_150 = arith.constant 6 : index
    %c32_151 = arith.constant 32 : index
    %240 = vector.load %arg5[%c6_150, %c32_151] : memref<8x128xf32, #tpu.memory_space<vmem>>, vector<1x8xf32>
    tpu.vector_store %arg5[%c6_150, %c32_151], %239 {strides = array<i32>} : memref<8x128xf32, #tpu.memory_space<vmem>>, vector<1x8xf32>,
    %c7_i32 = arith.constant 7 : i32
    %241 = arith.addi %0, %c7_i32 : i32
    %242 = arith.index_cast %241 : i32 to index
    %243 = memref.load %arg1[%242] : memref<8xi32, #tpu.memory_space<smem>>
    %c4_i32_152 = arith.constant 4 : i32
    %244 = arith.muli %243, %c4_i32_152 : i32
    %c0_i32_153 = arith.constant 0 : i32
    %245 = arith.addi %244, %c0_i32_153 : i32
    %246 = arith.index_cast %245 : i32 to index
    %247 = memref.load %arg2[%246] : memref<64xi32, #tpu.memory_space<smem>>
    %248 = arith.index_cast %247 : i32 to index
    %c0_154 = arith.constant 0 : index
    %249 = vector.load %arg3[%248, %c0_154] : memref<32x8xf32, #tpu.memory_space<vmem>>, vector<1x8xf32>
    %c7 = arith.constant 7 : index
    %c0_155 = arith.constant 0 : index
    %250 = vector.load %arg5[%c7, %c0_155] : memref<8x128xf32, #tpu.memory_space<vmem>>, vector<1x8xf32>
    tpu.vector_store %arg5[%c7, %c0_155], %249 {strides = array<i32>} : memref<8x128xf32, #tpu.memory_space<vmem>>, vector<1x8xf32>,
    %c4_i32_156 = arith.constant 4 : i32
    %251 = arith.muli %243, %c4_i32_156 : i32
    %c1_i32_157 = arith.constant 1 : i32
    %252 = arith.addi %251, %c1_i32_157 : i32
    %253 = arith.index_cast %252 : i32 to index
    %254 = memref.load %arg2[%253] : memref<64xi32, #tpu.memory_space<smem>>
    %255 = arith.index_cast %254 : i32 to index
    %c0_158 = arith.constant 0 : index
    %256 = vector.load %arg3[%255, %c0_158] : memref<32x8xf32, #tpu.memory_space<vmem>>, vector<1x8xf32>
    %c7_159 = arith.constant 7 : index
    %c8_160 = arith.constant 8 : index
    %257 = vector.load %arg5[%c7_159, %c8_160] : memref<8x128xf32, #tpu.memory_space<vmem>>, vector<1x8xf32>
    tpu.vector_store %arg5[%c7_159, %c8_160], %256 {strides = array<i32>} : memref<8x128xf32, #tpu.memory_space<vmem>>, vector<1x8xf32>,
    %c4_i32_161 = arith.constant 4 : i32
    %258 = arith.muli %243, %c4_i32_161 : i32
    %c2_i32_162 = arith.constant 2 : i32
    %259 = arith.addi %258, %c2_i32_162 : i32
    %260 = arith.index_cast %259 : i32 to index
    %261 = memref.load %arg2[%260] : memref<64xi32, #tpu.memory_space<smem>>
    %262 = arith.index_cast %261 : i32 to index
    %c0_163 = arith.constant 0 : index
    %263 = vector.load %arg3[%262, %c0_163] : memref<32x8xf32, #tpu.memory_space<vmem>>, vector<1x8xf32>
    %c7_164 = arith.constant 7 : index
    %c16_165 = arith.constant 16 : index
    %264 = vector.load %arg5[%c7_164, %c16_165] : memref<8x128xf32, #tpu.memory_space<vmem>>, vector<1x8xf32>
    tpu.vector_store %arg5[%c7_164, %c16_165], %263 {strides = array<i32>} : memref<8x128xf32, #tpu.memory_space<vmem>>, vector<1x8xf32>,
    %c4_i32_166 = arith.constant 4 : i32
    %265 = arith.muli %243, %c4_i32_166 : i32
    %c3_i32_167 = arith.constant 3 : i32
    %266 = arith.addi %265, %c3_i32_167 : i32
    %267 = arith.index_cast %266 : i32 to index
    %268 = memref.load %arg2[%267] : memref<64xi32, #tpu.memory_space<smem>>
    %269 = arith.index_cast %268 : i32 to index
    %c0_168 = arith.constant 0 : index
    %270 = vector.load %arg3[%269, %c0_168] : memref<32x8xf32, #tpu.memory_space<vmem>>, vector<1x8xf32>
    %c7_169 = arith.constant 7 : index
    %c24_170 = arith.constant 24 : index
    %271 = vector.load %arg5[%c7_169, %c24_170] : memref<8x128xf32, #tpu.memory_space<vmem>>, vector<1x8xf32>
    tpu.vector_store %arg5[%c7_169, %c24_170], %270 {strides = array<i32>} : memref<8x128xf32, #tpu.memory_space<vmem>>, vector<1x8xf32>,
    %272 = arith.index_cast %243 : i32 to index
    %c0_171 = arith.constant 0 : index
    %273 = vector.load %arg4[%272, %c0_171] : memref<16x8xf32, #tpu.memory_space<vmem>>, vector<1x8xf32>
    %c7_172 = arith.constant 7 : index
    %c32_173 = arith.constant 32 : index
    %274 = vector.load %arg5[%c7_172, %c32_173] : memref<8x128xf32, #tpu.memory_space<vmem>>, vector<1x8xf32>
    tpu.vector_store %arg5[%c7_172, %c32_173], %273 {strides = array<i32>} : memref<8x128xf32, #tpu.memory_space<vmem>>, vector<1x8xf32>,
    return
  }
  func.func @transform_0(%arg0: i32, %arg1: memref<8xi32, #tpu.memory_space<smem>>, %arg2: memref<64xi32, #tpu.memory_space<smem>>) -> (i32, i32) {
    %c0_i32 = arith.constant 0 : i32
    %c0_i32_0 = arith.constant 0 : i32
    %c0_i32_1 = arith.constant 0 : i32
    return %c0_i32, %c0_i32_0 : i32, i32
  }
  func.func @transform_1(%arg0: i32, %arg1: memref<8xi32, #tpu.memory_space<smem>>, %arg2: memref<64xi32, #tpu.memory_space<smem>>) -> (i32, i32) {
    %c0_i32 = arith.constant 0 : i32
    %c0_i32_0 = arith.constant 0 : i32
    %c0_i32_1 = arith.constant 0 : i32
    return %c0_i32, %c0_i32_0 : i32, i32
  }
  func.func @transform_2(%arg0: i32, %arg1: memref<8xi32, #tpu.memory_space<smem>>, %arg2: memref<64xi32, #tpu.memory_space<smem>>) -> (i32, i32) {
    %c0_i32 = arith.constant 0 : i32
    %c0_i32_0 = arith.constant 0 : i32
    return %arg0, %c0_i32 : i32, i32
  }
}

</mosaic_0001>

<llo_original>
// kernel: tpu_custom_call.1
$region0: #{tpu_custom_call.1}
  #allocation0 [shape = 'u32[]', space=smem, size = 0x4, offset = 0x4, fixed_abs, tag = 'smem constant byte address 0x4 - core index']
  #allocation1 [shape = 'u32[144,128]{1,0:T(1,128)}', space=vmem, size = 0x12000, scoped, tag = 'internal scratch']
  #allocation2 [shape = 's32[1]{0}', space=sflag, size = 0x4, scoped, tag = 'scoped memory for tpu_custom_call.1']
  #allocation3 [shape = 'u8[512]{0}', space=smem, size = 0x200, scoped, tag = 'prefetched SMEM operand 0']
  #allocation4 [shape = 'u8[512]{0}', space=smem, size = 0x200, scoped, tag = 'prefetched SMEM operand 1']
  %s0 = inlined_call_operand.vmem [shape: s32[8], index: 0, kind: input, shape index: {}]
  %s1 = inlined_call_operand.vmem [shape: s32[64], index: 1, kind: input, shape index: {}]
  %s2 = inlined_call_operand.vmem [shape: f32[32,8], index: 2, kind: input, shape index: {}]
  %s3 = inlined_call_operand.vmem [shape: f32[16,8], index: 3, kind: input, shape index: {}]
  %s4 = inlined_call_operand.hbm [shape: f32[8,128], index: 4, kind: output, shape index: {}]
  %s5 = sld [smem:[#allocation0]]
  $region18: #{tpu_custom_call.1} parent=0
    _
  %s7 = ssub.s32 1, %s5
  %s8 = scalar_select 0, %s7, %s5
  %s9 = sshll.u32 %s0, 4
  %s10 = int_to_ptr.vmem [resolvable:$true] %s9
  %12 = dma.vmem_to_smem %s10, 16, [#allocation3], [#allocation2]
  %s13 = sshll.u32 %s1, 4
  %s14 = int_to_ptr.vmem [resolvable:$true] %s13
  %16 = dma.vmem_to_smem %s14, 16, [#allocation4], [#allocation2]
  %17 = dma.done [#allocation2], 32
  %18 = sfence
  $region1: #{tpu_custom_call.1} parent=0
    #allocation5 [shape = 'u8[4096]{0}', space=vmem, size = 0x1000, scoped, tag = 'output window, operand 0, single buffered']
    #allocation6 [shape = 's32[1]{0}', space=sflag, size = 0x4, scoped, tag = 'scoped memory for tpu_custom_call.1']
    %19 = vsyncpa [#allocation6], 0
    // Predicated region
    $region2: #{tpu_custom_call.1} parent=1 // pred_check
      _
    $region3: #{tpu_custom_call.1} parent=1 // pred_check_branch
      %21 = sbr.rel (0) target = $region5
    $region4: #{tpu_custom_call.1} parent=1 // pred_region
      _
    $region5: #{tpu_custom_call.1} parent=1 // pred_fallthru
      _
    // Predicated region
    $region6: #{tpu_custom_call.1} parent=1 // pred_check
      _
    $region7: #{tpu_custom_call.1} parent=1 // pred_check_branch
      %23 = sbr.rel (0) target = $region9
    $region8: #{tpu_custom_call.1} parent=1 // pred_region
      _
    $region9: #{tpu_custom_call.1} parent=1 // pred_fallthru
      _
    %s24 = smul.u32 0, 8
    %25 = vst [vmem:[#allocation5] sm:$0xff] 0.0
    %s26 = sld [smem:[#allocation3 + %s24]]
    %s27 = smul.u32 %s26, 4
    %s28 = sld [smem:[#allocation4 + %s27]]
    %s29 = scalar_lea.vmem %s2, %s28
    %v30 = vld [vmem:[%s29] sm:$0x1]
    %vm31 = vcmask 57344
    %32 = vst.msk [vmem:[#allocation5] sm:$0x1] %vm31, %v30
    %s33 = sadd.s32 %s27, 1
    %s34 = sld [smem:[#allocation4 + %s33]]
    %s35 = scalar_lea.vmem %s2, %s34
    %v36 = vld [vmem:[%s35] sm:$0x1]
    %38 = vrot.lane.b32.xlu0 %v36, 8
    %v39 = vpop.permute.xlu0 %38
    %vm41 = vcmask 122944
    %42 = vst.msk [vmem:[#allocation5] sm:$0x1] %vm41, %v39
    %s43 = sadd.s32 %s27, 2
    %s44 = sld [smem:[#allocation4 + %s43]]
    %s45 = scalar_lea.vmem %s2, %s44
    %v46 = vld [vmem:[%s45] sm:$0x1]
    %48 = vrot.lane.b32.xlu0 %v46, 16
    %v49 = vpop.permute.xlu0 %48
    %vm51 = vcmask 188544
    %52 = vst.msk [vmem:[#allocation5] sm:$0x1] %vm51, %v49
    %s53 = sadd.s32 %s27, 3
    %s54 = sld [smem:[#allocation4 + %s53]]
    %s55 = scalar_lea.vmem %s2, %s54
    %v56 = vld [vmem:[%s55] sm:$0x1]
    %58 = vrot.lane.b32.xlu0 %v56, 24
    %v59 = vpop.permute.xlu0 %58
    %vm61 = vcmask 254144
    %62 = vst.msk [vmem:[#allocation5] sm:$0x1] %vm61, %v59
    %s63 = scalar_lea.vmem %s3, %s26
    %v64 = vld [vmem:[%s63] sm:$0x1]
    %66 = vrot.lane.b32.xlu0 %v64, 32
    %v67 = vpop.permute.xlu0 %66
    %vm69 = vcmask 319744
    %70 = vst.msk [vmem:[#allocation5] sm:$0x1] %vm69, %v67
    %s71 = sadd.s32 %s24, 1
    %s72 = sld [smem:[#allocation3 + %s71]]
    %s73 = smul.u32 %s72, 4
    %s74 = sld [smem:[#allocation4 + %s73]]
    %s75 = scalar_lea.vmem %s2, %s74
    %v76 = vld [vmem:[%s75] sm:$0x1]
    %77 = vst.msk [vmem:[#allocation5 + $0x1] sm:$0x1] %vm31, %v76
    %s78 = sadd.s32 %s73, 1
    %s79 = sld [smem:[#allocation4 + %s78]]
    %s80 = scalar_lea.vmem %s2, %s79
    %v81 = vld [vmem:[%s80] sm:$0x1]
    %83 = vrot.lane.b32.xlu0 %v81, 8
    %v84 = vpop.permute.xlu0 %83
    %86 = vst.msk [vmem:[#allocation5 + $0x1] sm:$0x1] %vm41, %v84
    %s87 = sadd.s32 %s73, 2
    %s88 = sld [smem:[#allocation4 + %s87]]
    %s89 = scalar_lea.vmem %s2, %s88
    %v90 = vld [vmem:[%s89] sm:$0x1]
    %92 = vrot.lane.b32.xlu0 %v90, 16
    %v93 = vpop.permute.xlu0 %92
    %95 = vst.msk [vmem:[#allocation5 + $0x1] sm:$0x1] %vm51, %v93
    %s96 = sadd.s32 %s73, 3
    %s97 = sld [smem:[#allocation4 + %s96]]
    %s98 = scalar_lea.vmem %s2, %s97
    %v99 = vld [vmem:[%s98] sm:$0x1]
    %101 = vrot.lane.b32.xlu0 %v99, 24
    %v102 = vpop.permute.xlu0 %101
    %104 = vst.msk [vmem:[#allocation5 + $0x1] sm:$0x1] %vm61, %v102
    %s105 = scalar_lea.vmem %s3, %s72
    %v106 = vld [vmem:[%s105] sm:$0x1]
    %108 = vrot.lane.b32.xlu0 %v106, 32
    %v109 = vpop.permute.xlu0 %108
    %111 = vst.msk [vmem:[#allocation5 + $0x1] sm:$0x1] %vm69, %v109
    %s112 = sadd.s32 %s24, 2
    %s113 = sld [smem:[#allocation3 + %s112]]
    %s114 = smul.u32 %s113, 4
    %s115 = sld [smem:[#allocation4 + %s114]]
    %s116 = scalar_lea.vmem %s2, %s115
    %v117 = vld [vmem:[%s116] sm:$0x1]
    %118 = vst.msk [vmem:[#allocation5 + $0x2] sm:$0x1] %vm31, %v117
    %s119 = sadd.s32 %s114, 1
    %s120 = sld [smem:[#allocation4 + %s119]]
    %s121 = scalar_lea.vmem %s2, %s120
    %v122 = vld [vmem:[%s121] sm:$0x1]
    %124 = vrot.lane.b32.xlu0 %v122, 8
    %v125 = vpop.permute.xlu0 %124
    %127 = vst.msk [vmem:[#allocation5 + $0x2] sm:$0x1] %vm41, %v125
    %s128 = sadd.s32 %s114, 2
    %s129 = sld [smem:[#allocation4 + %s128]]
    %s130 = scalar_lea.vmem %s2, %s129
    %v131 = vld [vmem:[%s130] sm:$0x1]
    %133 = vrot.lane.b32.xlu0 %v131, 16
    %v134 = vpop.permute.xlu0 %133
    %136 = vst.msk [vmem:[#allocation5 + $0x2] sm:$0x1] %vm51, %v134
    %s137 = sadd.s32 %s114, 3
    %s138 = sld [smem:[#allocation4 + %s137]]
    %s139 = scalar_lea.vmem %s2, %s138
    %v140 = vld [vmem:[%s139] sm:$0x1]
    %142 = vrot.lane.b32.xlu0 %v140, 24
    %v143 = vpop.permute.xlu0 %142
    %145 = vst.msk [vmem:[#allocation5 + $0x2] sm:$0x1] %vm61, %v143
    %s146 = scalar_lea.vmem %s3, %s113
    %v147 = vld [vmem:[%s146] sm:$0x1]
    %149 = vrot.lane.b32.xlu0 %v147, 32
    %v150 = vpop.permute.xlu0 %149
    %152 = vst.msk [vmem:[#allocation5 + $0x2] sm:$0x1] %vm69, %v150
    %s153 = sadd.s32 %s24, 3
    %s154 = sld [smem:[#allocation3 + %s153]]
    %s155 = smul.u32 %s154, 4
    %s156 = sld [smem:[#allocation4 + %s155]]
    %s157 = scalar_lea.vmem %s2, %s156
    %v158 = vld [vmem:[%s157] sm:$0x1]
    %159 = vst.msk [vmem:[#allocation5 + $0x3] sm:$0x1] %vm31, %v158
    %s160 = sadd.s32 %s155, 1
    %s161 = sld [smem:[#allocation4 + %s160]]
    %s162 = scalar_lea.vmem %s2, %s161
    %v163 = vld [vmem:[%s162] sm:$0x1]
    %165 = vrot.lane.b32.xlu0 %v163, 8
    %v166 = vpop.permute.xlu0 %165
    %168 = vst.msk [vmem:[#allocation5 + $0x3] sm:$0x1] %vm41, %v166
    %s169 = sadd.s32 %s155, 2
    %s170 = sld [smem:[#allocation4 + %s169]]
    %s171 = scalar_lea.vmem %s2, %s170
    %v172 = vld [vmem:[%s171] sm:$0x1]
    %174 = vrot.lane.b32.xlu0 %v172, 16
    %v175 = vpop.permute.xlu0 %174
    %177 = vst.msk [vmem:[#allocation5 + $0x3] sm:$0x1] %vm51, %v175
    %s178 = sadd.s32 %s155, 3
    %s179 = sld [smem:[#allocation4 + %s178]]
    %s180 = scalar_lea.vmem %s2, %s179
    %v181 = vld [vmem:[%s180] sm:$0x1]
    %183 = vrot.lane.b32.xlu0 %v181, 24
    %v184 = vpop.permute.xlu0 %183
    %186 = vst.msk [vmem:[#allocation5 + $0x3] sm:$0x1] %vm61, %v184
    %s187 = scalar_lea.vmem %s3, %s154
    %v188 = vld [vmem:[%s187] sm:$0x1]
    %190 = vrot.lane.b32.xlu0 %v188, 32
    %v191 = vpop.permute.xlu0 %190
    %193 = vst.msk [vmem:[#allocation5 + $0x3] sm:$0x1] %vm69, %v191
    %s194 = sadd.s32 %s24, 4
    %s195 = sld [smem:[#allocation3 + %s194]]
    %s196 = smul.u32 %s195, 4
    %s197 = sld [smem:[#allocation4 + %s196]]
    %s198 = scalar_lea.vmem %s2, %s197
    %v199 = vld [vmem:[%s198] sm:$0x1]
    %200 = vst.msk [vmem:[#allocation5 + $0x4] sm:$0x1] %vm31, %v199
    %s201 = sadd.s32 %s196, 1
    %s202 = sld [smem:[#allocation4 + %s201]]
    %s203 = scalar_lea.vmem %s2, %s202
    %v204 = vld [vmem:[%s203] sm:$0x1]
    %206 = vrot.lane.b32.xlu0 %v204, 8
    %v207 = vpop.permute.xlu0 %206
    %209 = vst.msk [vmem:[#allocation5 + $0x4] sm:$0x1] %vm41, %v207
    %s210 = sadd.s32 %s196, 2
    %s211 = sld [smem:[#allocation4 + %s210]]
    %s212 = scalar_lea.vmem %s2, %s211
    %v213 = vld [vmem:[%s212] sm:$0x1]
    %215 = vrot.lane.b32.xlu0 %v213, 16
    %v216 = vpop.permute.xlu0 %215
    %218 = vst.msk [vmem:[#allocation5 + $0x4] sm:$0x1] %vm51, %v216
    %s219 = sadd.s32 %s196, 3
    %s220 = sld [smem:[#allocation4 + %s219]]
    %s221 = scalar_lea.vmem %s2, %s220
    %v222 = vld [vmem:[%s221] sm:$0x1]
    %224 = vrot.lane.b32.xlu0 %v222, 24
    %v225 = vpop.permute.xlu0 %224
    %227 = vst.msk [vmem:[#allocation5 + $0x4] sm:$0x1] %vm61, %v225
    %s228 = scalar_lea.vmem %s3, %s195
    %v229 = vld [vmem:[%s228] sm:$0x1]
    %231 = vrot.lane.b32.xlu0 %v229, 32
    %v232 = vpop.permute.xlu0 %231
    %234 = vst.msk [vmem:[#allocation5 + $0x4] sm:$0x1] %vm69, %v232
    %s235 = sadd.s32 %s24, 5
    %s236 = sld [smem:[#allocation3 + %s235]]
    %s237 = smul.u32 %s236, 4
    %s238 = sld [smem:[#allocation4 + %s237]]
    %s239 = scalar_lea.vmem %s2, %s238
    %v240 = vld [vmem:[%s239] sm:$0x1]
    %241 = vst.msk [vmem:[#allocation5 + $0x5] sm:$0x1] %vm31, %v240
    %s242 = sadd.s32 %s237, 1
    %s243 = sld [smem:[#allocation4 + %s242]]
    %s244 = scalar_lea.vmem %s2, %s243
    %v245 = vld [vmem:[%s244] sm:$0x1]
    %247 = vrot.lane.b32.xlu0 %v245, 8
    %v248 = vpop.permute.xlu0 %247
    %250 = vst.msk [vmem:[#allocation5 + $0x5] sm:$0x1] %vm41, %v248
    %s251 = sadd.s32 %s237, 2
    %s252 = sld [smem:[#allocation4 + %s251]]
    %s253 = scalar_lea.vmem %s2, %s252
    %v254 = vld [vmem:[%s253] sm:$0x1]
    %256 = vrot.lane.b32.xlu0 %v254, 16
    %v257 = vpop.permute.xlu0 %256
    %259 = vst.msk [vmem:[#allocation5 + $0x5] sm:$0x1] %vm51, %v257
    %s260 = sadd.s32 %s237, 3
    %s261 = sld [smem:[#allocation4 + %s260]]
    %s262 = scalar_lea.vmem %s2, %s261
    %v263 = vld [vmem:[%s262] sm:$0x1]
    %265 = vrot.lane.b32.xlu0 %v263, 24
    %v266 = vpop.permute.xlu0 %265
    %268 = vst.msk [vmem:[#allocation5 + $0x5] sm:$0x1] %vm61, %v266
    %s269 = scalar_lea.vmem %s3, %s236
    %v270 = vld [vmem:[%s269] sm:$0x1]
    %272 = vrot.lane.b32.xlu0 %v270, 32
    %v273 = vpop.permute.xlu0 %272
    %275 = vst.msk [vmem:[#allocation5 + $0x5] sm:$0x1] %vm69, %v273
    %s276 = sadd.s32 %s24, 6
    %s277 = sld [smem:[#allocation3 + %s276]]
    %s278 = smul.u32 %s277, 4
    %s279 = sld [smem:[#allocation4 + %s278]]
    %s280 = scalar_lea.vmem %s2, %s279
    %v281 = vld [vmem:[%s280] sm:$0x1]
    %282 = vst.msk [vmem:[#allocation5 + $0x6] sm:$0x1] %vm31, %v281
    %s283 = sadd.s32 %s278, 1
    %s284 = sld [smem:[#allocation4 + %s283]]
    %s285 = scalar_lea.vmem %s2, %s284
    %v286 = vld [vmem:[%s285] sm:$0x1]
    %288 = vrot.lane.b32.xlu0 %v286, 8
    %v289 = vpop.permute.xlu0 %288
    %291 = vst.msk [vmem:[#allocation5 + $0x6] sm:$0x1] %vm41, %v289
    %s292 = sadd.s32 %s278, 2
    %s293 = sld [smem:[#allocation4 + %s292]]
    %s294 = scalar_lea.vmem %s2, %s293
    %v295 = vld [vmem:[%s294] sm:$0x1]
    %297 = vrot.lane.b32.xlu0 %v295, 16
    %v298 = vpop.permute.xlu0 %297
    %300 = vst.msk [vmem:[#allocation5 + $0x6] sm:$0x1] %vm51, %v298
    %s301 = sadd.s32 %s278, 3
    %s302 = sld [smem:[#allocation4 + %s301]]
    %s303 = scalar_lea.vmem %s2, %s302
    %v304 = vld [vmem:[%s303] sm:$0x1]
    %306 = vrot.lane.b32.xlu0 %v304, 24
    %v307 = vpop.permute.xlu0 %306
    %309 = vst.msk [vmem:[#allocation5 + $0x6] sm:$0x1] %vm61, %v307
    %s310 = scalar_lea.vmem %s3, %s277
    %v311 = vld [vmem:[%s310] sm:$0x1]
    %313 = vrot.lane.b32.xlu0 %v311, 32
    %v314 = vpop.permute.xlu0 %313
    %316 = vst.msk [vmem:[#allocation5 + $0x6] sm:$0x1] %vm69, %v314
    %s317 = sadd.s32 %s24, 7
    %s318 = sld [smem:[#allocation3 + %s317]]
    %s319 = smul.u32 %s318, 4
    %s320 = sld [smem:[#allocation4 + %s319]]
    %s321 = scalar_lea.vmem %s2, %s320
    %v322 = vld [vmem:[%s321] sm:$0x1]
    %323 = vst.msk [vmem:[#allocation5 + $0x7] sm:$0x1] %vm31, %v322
    %s324 = sadd.s32 %s319, 1
    %s325 = sld [smem:[#allocation4 + %s324]]
    %s326 = scalar_lea.vmem %s2, %s325
    %v327 = vld [vmem:[%s326] sm:$0x1]
    %329 = vrot.lane.b32.xlu0 %v327, 8
    %v330 = vpop.permute.xlu0 %329
    %332 = vst.msk [vmem:[#allocation5 + $0x7] sm:$0x1] %vm41, %v330
    %s333 = sadd.s32 %s319, 2
    %s334 = sld [smem:[#allocation4 + %s333]]
    %s335 = scalar_lea.vmem %s2, %s334
    %v336 = vld [vmem:[%s335] sm:$0x1]
    %338 = vrot.lane.b32.xlu0 %v336, 16
    %v339 = vpop.permute.xlu0 %338
    %341 = vst.msk [vmem:[#allocation5 + $0x7] sm:$0x1] %vm51, %v339
    %s342 = sadd.s32 %s319, 3
    %s343 = sld [smem:[#allocation4 + %s342]]
    %s344 = scalar_lea.vmem %s2, %s343
    %v345 = vld [vmem:[%s344] sm:$0x1]
    %347 = vrot.lane.b32.xlu0 %v345, 24
    %v348 = vpop.permute.xlu0 %347
    %350 = vst.msk [vmem:[#allocation5 + $0x7] sm:$0x1] %vm61, %v348
    %s351 = scalar_lea.vmem %s3, %s318
    %v352 = vld [vmem:[%s351] sm:$0x1]
    %354 = vrot.lane.b32.xlu0 %v352, 32
    %v355 = vpop.permute.xlu0 %354
    %357 = vst.msk [vmem:[#allocation5 + $0x7] sm:$0x1] %vm69, %v355
    // Predicated region
    $region10: #{tpu_custom_call.1} parent=1 // pred_check
      _
    $region11: #{tpu_custom_call.1} parent=1 // pred_check_branch
      %359 = sbr.rel (0) target = $region13
    $region12: #{tpu_custom_call.1} parent=1 // pred_region
      %s361 = ssub.s32 128, 128
      %362 = vsyncadd [#allocation6], %s361
      %s364 = sshll.u32 [#allocation5], 4
      %s365 = int_to_ptr.vmem [resolvable:$true] %s364
      %367 = dma.vmem_to_hbm [thread:$0]  %s365, 128, %s4, [#allocation6]
    $region13: #{tpu_custom_call.1} parent=1 // pred_fallthru
      _
    // Predicated region
    $region14: #{tpu_custom_call.1} parent=1 // pred_check
      _
    $region15: #{tpu_custom_call.1} parent=1 // pred_check_branch
      %369 = sbr.rel (0) target = $region17
    $region16: #{tpu_custom_call.1} parent=1 // pred_region
      %370 = dma.done [#allocation6], 128
    $region17: #{tpu_custom_call.1} parent=1 // pred_fallthru
      _
    %371 = vsyncpa [#allocation6], 1

</llo_original>
